<compile_context>
chip_gen: v6e
topology: v6e:2x2x1
jax: 0.10.0
libtpu: 0.0.40
codegen_flags: <defaults>
</compile_context>

<pallas_src>
import math

import jax
import jax.numpy as jnp
from jax.experimental import pallas as pl
from jax.experimental.pallas import tpu as pltpu

D_MODEL = 32
MAX_LEN = 64
_LANES = 128


# ---------------------------------------------------------------------------
# host-side buffer init (matches torch PositionalEncoding.__init__ exactly)
# ---------------------------------------------------------------------------
def make_pe(d_model: int = D_MODEL, max_len: int = MAX_LEN) -> jnp.ndarray:
    position = jnp.arange(max_len, dtype=jnp.float32)[:, None]              # (max_len, 1)
    div_term = jnp.exp(
        jnp.arange(0, d_model, 2, dtype=jnp.float32) * (-math.log(10000.0) / d_model)
    )                                                                        # (d_model/2,)
    ang = position * div_term                                                # (max_len, d_model/2)
    pe = jnp.zeros((max_len, d_model), jnp.float32)
    pe = pe.at[:, 0::2].set(jnp.sin(ang))
    pe = pe.at[:, 1::2].set(jnp.cos(ang))
    return pe                                                                # (max_len, d_model)


def _round_up(a: int, b: int) -> int:
    return (a + b - 1) // b * b


# ---------------------------------------------------------------------------
# Pallas kernel: pure vreg-for-vreg add on a lane-dense (tile_rows, 128) block.
# ---------------------------------------------------------------------------
def pe_add_kernel(x_ref, pe_ref, o_ref):
    o_ref[...] = x_ref[...] + pe_ref[...]


def positional_encoding(x: jnp.ndarray, pe: jnp.ndarray, *, max_tile_rows: int = 2048) -> jnp.ndarray:
    """x: (batch, seq_len, d_model); pe: (max_len, d_model). Eval-mode forward."""
    B, L, D = x.shape
    assert pe.shape[0] >= L and pe.shape[1] == D
    dtype = x.dtype

    # Pre-broadcast the additive slab over the batch in x's dtype (wrapper-side,
    # fused by XLA into the pad/reshape below), then flatten both operands to a
    # lane-dense (rows, 128) layout so the kernel sees full, unmasked vregs.
    pe_slab = jnp.broadcast_to(pe[:L].astype(dtype)[None], (B, L, D))

    total = B * L * D
    rows = _round_up(total, _LANES) // _LANES
    tile_rows = min(max_tile_rows, _round_up(rows, 8))      # multiple of 8 sublanes
    rows_pad = _round_up(rows, tile_rows)
    padded_total = rows_pad * _LANES

    def to_slab(a):
        flat = a.reshape(-1)
        if padded_total != total:
            flat = jnp.pad(flat, (0, padded_total - total))
        return flat.reshape(rows_pad, _LANES)

    x2d = to_slab(x)
    pe2d = to_slab(pe_slab)

    itemsize = jnp.dtype(dtype).itemsize
    cost = pl.CostEstimate(
        flops=total,
        transcendentals=0,
        bytes_accessed=3 * total * itemsize,
    )

    out2d = pl.pallas_call(
        pe_add_kernel,
        out_shape=jax.ShapeDtypeStruct((rows_pad, _LANES), dtype),
        grid=(rows_pad // tile_rows,),
        in_specs=[
            pl.BlockSpec((tile_rows, _LANES), lambda i: (i, 0)),
            pl.BlockSpec((tile_rows, _LANES), lambda i: (i, 0)),
        ],
        out_specs=pl.BlockSpec((tile_rows, _LANES), lambda i: (i, 0)),
        input_output_aliases={0: 0},  # write the sum back into x's slab buffer
        compiler_params=pltpu.CompilerParams(
            dimension_semantics=("parallel",),  # shards row tiles across v7x TCs
        ),
        cost_estimate=cost,
    )(x2d, pe2d)

    return out2d.reshape(-1)[:total].reshape(B, L, D)


# jit the wrapper so the reshape/pad/broadcast plumbing fuses and the aliased
# (donated) input is a clean intermediate buffer.
positional_encoding_jit = jax.jit(positional_encoding)


# ---------------------------------------------------------------------------
# pure-JAX reference (same math as torch forward with indices=None, eval mode)
# ---------------------------------------------------------------------------
def reference(x: jnp.ndarray, pe: jnp.ndarray) -> jnp.ndarray:
    L = x.shape[1]
    return x + pe[:L].astype(x.dtype)[None, :, :]


if __name__ == "__main__":
    B, L, D = 2, 8, D_MODEL  # batch, seq_len, embedding_dim

    key = jax.random.PRNGKey(0)
    x = jax.random.normal(key, (B, L, D), jnp.float32)
    pe = make_pe(D, MAX_LEN)

    out = jax.block_until_ready(positional_encoding_jit(x, pe))
    ref = jax.block_until_ready(reference(x, pe))

    assert out.shape == (B, L, D), out.shape
    max_err = float(jnp.max(jnp.abs(out - ref)))
    assert max_err < 1e-6, f"max abs err {max_err}"

    print("KERNEL_OK")
</pallas_src>

<mosaic_0001>
module attributes {stable_mosaic.version = 11 : i64} {
  func.func @pe_add_kernel(%arg0: i32, %arg1: memref<8x128xf32, #tpu.memory_space<vmem>>, %arg2: memref<8x128xf32, #tpu.memory_space<vmem>>, %arg3: memref<8x128xf32, #tpu.memory_space<vmem>>) attributes {dimension_semantics = [#tpu.dimension_semantics<parallel>], iteration_bounds = array<i64: 1>, scalar_prefetch = 0 : i64, scratch_operands = 0 : i64, tpu.core_type = #tpu.core_type<tc>, window_params = [{transform_indices = @transform_0, window_bounds = array<i64: 8, 128>}, {transform_indices = @transform_1, window_bounds = array<i64: 8, 128>}, {transform_indices = @transform_2, window_bounds = array<i64: 8, 128>}]} {
    %c0 = arith.constant 0 : index
    %c0_0 = arith.constant 0 : index
    %0 = vector.load %arg1[%c0, %c0_0] : memref<8x128xf32, #tpu.memory_space<vmem>>, vector<8x128xf32>
    %c0_1 = arith.constant 0 : index
    %c0_2 = arith.constant 0 : index
    %1 = vector.load %arg2[%c0_1, %c0_2] : memref<8x128xf32, #tpu.memory_space<vmem>>, vector<8x128xf32>
    %2 = arith.addf %0, %1 : vector<8x128xf32>
    %c0_3 = arith.constant 0 : index
    %c0_4 = arith.constant 0 : index
    %3 = vector.load %arg3[%c0_3, %c0_4] : memref<8x128xf32, #tpu.memory_space<vmem>>, vector<8x128xf32>
    tpu.vector_store %arg3[%c0_3, %c0_4], %2 {strides = array<i32>} : memref<8x128xf32, #tpu.memory_space<vmem>>, vector<8x128xf32>,
    return
  }
  func.func @transform_0(%arg0: i32) -> (i32, i32) {
    %c0_i32 = arith.constant 0 : i32
    %c0_i32_0 = arith.constant 0 : i32
    return %arg0, %c0_i32 : i32, i32
  }
  func.func @transform_1(%arg0: i32) -> (i32, i32) {
    %c0_i32 = arith.constant 0 : i32
    %c0_i32_0 = arith.constant 0 : i32
    return %arg0, %c0_i32 : i32, i32
  }
  func.func @transform_2(%arg0: i32) -> (i32, i32) {
    %c0_i32 = arith.constant 0 : i32
    %c0_i32_0 = arith.constant 0 : i32
    return %arg0, %c0_i32 : i32, i32
  }
}

</mosaic_0001>

<llo_original>
// kernel: positional_encoding.1
$region0: #{positional_encoding.1}
  #allocation0 [shape = 'u32[]', space=smem, size = 0x4, offset = 0x4, fixed_abs, tag = 'smem constant byte address 0x4 - core index']
  #allocation1 [shape = 'u32[144,128]{1,0:T(1,128)}', space=vmem, size = 0x12000, scoped, tag = 'internal scratch']
  %s0 = inlined_call_operand.vmem [shape: f32[8,128], index: 0, kind: input, shape index: {}, may-alias: {0,2}]
  %s1 = inlined_call_operand.vmem [shape: f32[8,128], index: 1, kind: input, shape index: {}]
  %s2 = inlined_call_operand.vmem [shape: f32[8,128], index: 2, kind: output, shape index: {}, may-alias: {0,2}]
  %s3 = sld [smem:[#allocation0]]
  $region18: #{positional_encoding.1} parent=0
    _
  %s5 = ssub.s32 1, %s3
  %s6 = scalar_select 0, %s5, %s3
  // Predicated region
  $region2: #{positional_encoding.1} parent=0 // pred_check
    _
  $region3: #{positional_encoding.1} parent=0 // pred_check_branch
    %8 = sbr.rel (0) target = $region5
  $region4: #{positional_encoding.1} parent=0 // pred_region
    _
  $region5: #{positional_encoding.1} parent=0 // pred_fallthru
    _
  // Predicated region
  $region6: #{positional_encoding.1} parent=0 // pred_check
    _
  $region7: #{positional_encoding.1} parent=0 // pred_check_branch
    %10 = sbr.rel (0) target = $region9
  $region8: #{positional_encoding.1} parent=0 // pred_region
    _
  $region9: #{positional_encoding.1} parent=0 // pred_fallthru
    _
  %v11 = vld [vmem:[%s0] sm:$0xff]
  %v12 = vld [vmem:[%s1] sm:$0xff]
  %v13 = vadd.f32 %v11, %v12
  %14 = vst [vmem:[%s2] sm:$0xff] %v13
  // Predicated region
  $region10: #{positional_encoding.1} parent=0 // pred_check
    _
  $region11: #{positional_encoding.1} parent=0 // pred_check_branch
    %16 = sbr.rel (0) target = $region13
  $region12: #{positional_encoding.1} parent=0 // pred_region
    _
  $region13: #{positional_encoding.1} parent=0 // pred_fallthru
    _
  // Predicated region
  $region14: #{positional_encoding.1} parent=0 // pred_check
    _
  $region15: #{positional_encoding.1} parent=0 // pred_check_branch
    %18 = sbr.rel (0) target = $region17
  $region16: #{positional_encoding.1} parent=0 // pred_region
    _
  $region17: #{positional_encoding.1} parent=0 // pred_fallthru
    _

</llo_original>
